<compile_context>
chip_gen: v7x
topology: tpu7x:2x2x1
jax: 0.10.0
libtpu: 0.0.40
codegen_flags: <defaults>
</compile_context>

<pallas_src>
import functools

import jax
import jax.numpy as jnp
import numpy as np
from jax import lax
from jax.experimental import pallas as pl
from jax.experimental.pallas import tpu as pltpu

_NEG_INF = -1e30  # finite "minus infinity": avoids inf-inf NaN corner cases


# ----------------------------------------------------------------------------
# Small helpers
# ----------------------------------------------------------------------------
def _round_up(n, m):
    return ((n + m - 1) // m) * m


def _pad_to(x, shape):
    pads = [(0, t - s) for s, t in zip(x.shape, shape)]
    if all(p == (0, 0) for p in pads):
        return x
    return jnp.pad(x, pads)


def _largest_tile(n, cap):
    """Largest multiple of 8 that divides n (n is a multiple of 8) and is <= cap."""
    t = min(_round_up(cap, 8), n)
    t -= t % 8
    while t > 8 and n % t:
        t -= 8
    return max(t, 8)


def _device_kind():
    try:
        return jax.devices()[0].device_kind.lower()
    except Exception:
        return ""


def _vmem_capacity_bytes():
    try:
        info = pltpu.get_tpu_info()
        for attr in ("vmem_capacity_bytes", "vmem_bytes", "vmem_size_bytes"):
            v = getattr(info, attr, None)
            if v:
                return int(v)
    except Exception:
        pass
    return 64 * 2**20 if "v7" in _device_kind() else 128 * 2**20


def _default_exp_dtype():
    kind = _device_kind()
    if ("v6" in kind) or ("v7" in kind):
        return jnp.bfloat16          # bf16 EUP: ~2x exp throughput on v6e/v7x
    return jnp.float32               # v5e and older have no bf16 EUP/VPU


def _is_v5e():
    kind = _device_kind()
    return ("v5e" in kind) or ("v5 lite" in kind) or ("v5lite" in kind)


def _vmem_limit(vmem_cap, est):
    # Headroom above the tile estimate, but never more than ~78% of physical VMEM
    # (leaves room for compiler-internal scratch/semaphores on 64 MiB v7x parts,
    # while allowing ~100 MiB on 128 MiB v5e/v6e parts).
    return int(min(0.78 * vmem_cap, max(32 * 2**20, 1.5 * est)))


# ----------------------------------------------------------------------------
# Row/col-tiled linear projection kernel:  y = x @ W_t + b   (W_t pre-transposed)
# ----------------------------------------------------------------------------
def _linear_kernel(x_ref, w_ref, b_ref, o_ref, *, compute_dtype):
    x = x_ref[0].astype(compute_dtype)          # (TR, Fin)
    w = w_ref[...].astype(compute_dtype)        # (Fin, NT)
    y = jnp.dot(x, w, preferred_element_type=jnp.float32) + b_ref[...]
    o_ref[0] = y.astype(o_ref.dtype)


def _linear_pallas(x, w_t, b, row_tile, compute_dtype, vmem_cap):
    """x: (B, L, Fin) padded; w_t: (Fin, Fout) padded (pre-transposed); b: (1, Fout) f32."""
    B, L, Fin = x.shape
    Fout = w_t.shape[1]

    # Tile the output-feature dim only when the full weight panel would be large.
    NT = Fout
    if Fout > 1024:
        for cand in (1024, 512, 256, 128):
            if Fout % cand == 0:
                NT = cand
                break

    x_sz = jnp.dtype(x.dtype).itemsize
    w_sz = jnp.dtype(w_t.dtype).itemsize
    o_sz = jnp.dtype(compute_dtype).itemsize
    est = (2 * row_tile * Fin * x_sz + 2 * Fin * NT * w_sz + 2 * NT * 4
           + 2 * row_tile * NT * o_sz + 2 * row_tile * NT * 4)
    cost = pl.CostEstimate(
        flops=2 * B * L * Fin * Fout,
        transcendentals=0,
        bytes_accessed=int(x.size * x_sz + w_t.size * w_sz + b.size * 4
                           + B * L * Fout * o_sz))
    return pl.pallas_call(
        functools.partial(_linear_kernel, compute_dtype=compute_dtype),
        out_shape=jax.ShapeDtypeStruct((B, L, Fout), compute_dtype),
        grid_spec=pltpu.PrefetchScalarGridSpec(
            num_scalar_prefetch=0,
            grid=(B, L // row_tile, Fout // NT),
            in_specs=[pl.BlockSpec((1, row_tile, Fin), lambda bi, ri, ci: (bi, ri, 0)),
                      pl.BlockSpec((Fin, NT), lambda bi, ri, ci: (0, ci)),
                      pl.BlockSpec((1, NT), lambda bi, ri, ci: (0, ci))],
            out_specs=pl.BlockSpec((1, row_tile, NT), lambda bi, ri, ci: (bi, ri, ci)),
        ),
        compiler_params=pltpu.CompilerParams(
            dimension_semantics=("parallel", "parallel", "parallel"),
            vmem_limit_bytes=_vmem_limit(vmem_cap, est)),
        cost_estimate=cost,
    )(x, w_t, b)


# ----------------------------------------------------------------------------
# Path A: Lq-resident attention.  grid = (B, n_lk); Q/V live in VMEM per batch.
# The online softmax over Lq runs as an in-kernel loop over TLQ chunks.
# ----------------------------------------------------------------------------
def _attn_lq_resident_kernel(q_ref, k_ref, v_ref, o_ref, *scratch,
                             compute_dtype, exp_dtype, chunk, n_chunks,
                             lq_valid, mask_last):
    k = k_ref[0].astype(compute_dtype)                      # (TLK, F)

    def scores(q_tile, col0, masked):
        s = lax.dot_general(k, q_tile, (((1,), (1,)), ((), ())),
                            preferred_element_type=jnp.float32)
        if masked:   # static flag: only emitted for the padded (last) chunk
            col = col0 + lax.broadcasted_iota(jnp.int32, s.shape, 1)
            s = jnp.where(col < lq_valid, s, _NEG_INF)
        return s

    if n_chunks == 1:
        # Whole-Lq softmax in one shot (no scratch, no online accumulation).
        q = q_ref[0].astype(compute_dtype)                  # (Lq_pad, F)
        v = v_ref[0].astype(compute_dtype)
        s = scores(q, 0, mask_last)                         # (TLK, Lq_pad) f32
        m = jnp.max(s, axis=-1, keepdims=True)
        p = jnp.exp((s - m).astype(exp_dtype))
        l = jnp.sum(p.astype(jnp.float32), axis=-1, keepdims=True)
        acc = jnp.dot(p.astype(compute_dtype), v,
                      preferred_element_type=jnp.float32)
        o_ref[0] = (acc * pl.reciprocal(l, approx=True)).astype(o_ref.dtype)
        return

    m_sc, l_sc, acc_sc = scratch
    m_sc[...] = jnp.full(m_sc.shape, _NEG_INF, dtype=m_sc.dtype)
    l_sc[...] = jnp.zeros(l_sc.shape, dtype=l_sc.dtype)
    acc_sc[...] = jnp.zeros(acc_sc.shape, dtype=acc_sc.dtype)

    def process(c, masked):
        start = c * chunk
        if not isinstance(start, int):
            start = pl.multiple_of(start, chunk)
        q_c = q_ref[0, pl.ds(start, chunk), :].astype(compute_dtype)   # (chunk, F)
        v_c = v_ref[0, pl.ds(start, chunk), :].astype(compute_dtype)
        s = scores(q_c, c * chunk, masked)                             # (TLK, chunk)
        m_prev = m_sc[...]
        m_new = jnp.maximum(m_prev, jnp.max(s, axis=-1, keepdims=True))
        alpha = jnp.exp(m_prev - m_new)                                # (TLK, 1) f32
        p = jnp.exp((s - m_new).astype(exp_dtype))
        l_sc[...] = alpha * l_sc[...] + jnp.sum(p.astype(jnp.float32),
                                                axis=-1, keepdims=True)
        acc_sc[...] = alpha * acc_sc[...] + jnp.dot(
            p.astype(compute_dtype), v_c, preferred_element_type=jnp.float32)
        m_sc[...] = m_new

    n_full = n_chunks - 1 if mask_last else n_chunks
    if n_full > 0:
        @pl.loop(0, n_full)
        def _(c):
            process(c, masked=False)
    if mask_last:
        process(n_chunks - 1, masked=True)   # static final chunk: only one masked

    inv_l = pl.reciprocal(l_sc[...], approx=True)
    o_ref[0] = (acc_sc[...] * inv_l).astype(o_ref.dtype)


# ----------------------------------------------------------------------------
# Path B (fallback): flash-style grid (B, n_lk, n_lq); Lq is the innermost
# online-softmax axis, scratch persists across it.
# ----------------------------------------------------------------------------
def _attn_grid_lq_kernel(q_ref, k_ref, v_ref, o_ref, m_sc, l_sc, acc_sc, *,
                         compute_dtype, exp_dtype, lq_valid, lq_tile, mask_lq):
    j = pl.program_id(2)

    @pl.when(j == 0)
    def _init():
        m_sc[...] = jnp.full(m_sc.shape, _NEG_INF, dtype=m_sc.dtype)
        l_sc[...] = jnp.zeros(l_sc.shape, dtype=l_sc.dtype)
        acc_sc[...] = jnp.zeros(acc_sc.shape, dtype=acc_sc.dtype)

    k = k_ref[0].astype(compute_dtype)        # (TLK, F)
    q = q_ref[0].astype(compute_dtype)        # (TLQ, F)
    v = v_ref[0].astype(compute_dtype)        # (TLQ, F)

    s = lax.dot_general(k, q, (((1,), (1,)), ((), ())),
                        preferred_element_type=jnp.float32)       # (TLK, TLQ)

    if mask_lq:  # static flag: only emitted when Lq was zero-padded
        col = j * lq_tile + lax.broadcasted_iota(jnp.int32, s.shape, 1)
        s = jnp.where(col < lq_valid, s, _NEG_INF)

    m_prev = m_sc[...]
    m_new = jnp.maximum(m_prev, jnp.max(s, axis=-1, keepdims=True))
    alpha = jnp.exp(m_prev - m_new)
    p = jnp.exp((s - m_new).astype(exp_dtype))
    l_sc[...] = alpha * l_sc[...] + jnp.sum(p.astype(jnp.float32),
                                            axis=-1, keepdims=True)
    acc_sc[...] = alpha * acc_sc[...] + jnp.dot(
        p.astype(compute_dtype), v, preferred_element_type=jnp.float32)
    m_sc[...] = m_new

    @pl.when(j == pl.num_programs(2) - 1)
    def _finalize():
        inv_l = pl.reciprocal(l_sc[...], approx=True)
        o_ref[0] = (acc_sc[...] * inv_l).astype(o_ref.dtype)


# ----------------------------------------------------------------------------
# Public wrapper
# ----------------------------------------------------------------------------
def dot_product_attention(query, key, value, params=None, *,
                          compute_dtype=jnp.bfloat16,
                          exp_dtype=None,
                          lk_tile=1024, lq_tile=512,
                          lq_resident=None):
    """query: (B, Lq, F); key: (B, Lk, F); value: (B, Lq, F) -> (B, Lk, F)."""
    B, Lq, F = query.shape
    Bk, Lk, Fk = key.shape
    Bv, Lv, Fv = value.shape
    if not (B == Bk == Bv and F == Fk == Fv):
        raise ValueError("query/key/value must share batch and feature dims")
    if Lv != Lq:
        raise ValueError("value sequence length must equal query sequence length "
                         "(required by softmax(k q^T) @ v)")

    out_dtype = query.dtype
    out_sz = jnp.dtype(out_dtype).itemsize
    cd_sz = jnp.dtype(compute_dtype).itemsize
    if exp_dtype is None:
        exp_dtype = _default_exp_dtype()
    vmem_cap = _vmem_capacity_bytes()

    # ---- lane/sublane-aligned padded shapes and tile sizes -------------------
    F_pad = _round_up(F, 128)                                 # lane-dense features
    TLQ = _round_up(min(max(lq_tile, 8), _round_up(Lq, 8)), 8)
    Lq_pad = _round_up(Lq, TLQ)
    n_lq = Lq_pad // TLQ

    Lk8 = _round_up(Lk, 8)
    TLK = _round_up(min(max(lk_tile, 8), Lk8), 8)
    # v7x megacore: the two TensorCores shard (B, n_lk); when B == 1 make sure
    # there are >= 2 Lk tiles as long as there is enough work to split.
    if B == 1 and TLK >= Lk8 and Lk8 >= 1024:
        TLK = _round_up(-(-Lk8 // 2), 8)
    Lk_pad = _round_up(Lk, TLK)
    n_lk = Lk_pad // TLK

    q = _pad_to(query, (B, Lq_pad, F_pad))
    k = _pad_to(key, (B, Lk_pad, F_pad))
    v = _pad_to(value, (B, Lq_pad, F_pad))

    # ---- optional projections (hoisted row-tiled linear kernels) -------------
    if params is not None:
        def prep_w(w_t):
            return _pad_to(w_t, (F_pad, F_pad)).astype(compute_dtype)

        def prep_b(bias):
            return _pad_to(bias.reshape(1, F).astype(jnp.float32), (1, F_pad))

        rt_q = _largest_tile(Lq_pad, 512)
        rt_k = _largest_tile(Lk_pad, 512)
        q = _linear_pallas(q, prep_w(params["wq_t"]), prep_b(params["bq"]),
                           rt_q, compute_dtype, vmem_cap)
        k = _linear_pallas(k, prep_w(params["wk_t"]), prep_b(params["bk"]),
                           rt_k, compute_dtype, vmem_cap)
        v = _linear_pallas(v, prep_w(params["wv_t"]), prep_b(params["bv"]),
                           rt_q, compute_dtype, vmem_cap)
    # (no-projection path: no wrapper pre-cast -- the attention kernel casts on
    #  the fly, and K / resident Q / V are each streamed from HBM only once.)

    q_sz = jnp.dtype(q.dtype).itemsize
    k_sz = jnp.dtype(k.dtype).itemsize
    v_sz = jnp.dtype(v.dtype).itemsize
    mask_lq = Lq_pad != Lq

    # ---- choose attention path -----------------------------------------------
    est_resident = (2 * Lq_pad * F_pad * (q_sz + v_sz)        # Q+V double-buffered
                    + 2 * TLK * F_pad * k_sz                  # K double-buffered
                    + 2 * TLK * F_pad * out_sz                # out double-buffered
                    + (TLK * F_pad + 2 * TLK) * 4             # f32 scratch
                    + 4 * TLK * TLQ * 4)                      # score/exp temps
    if lq_resident is None:
        use_resident = est_resident <= int(0.45 * vmem_cap)
    else:
        use_resident = bool(lq_resident)

    if use_resident:
        kernel = functools.partial(
            _attn_lq_resident_kernel,
            compute_dtype=compute_dtype, exp_dtype=exp_dtype,
            chunk=TLQ, n_chunks=n_lq, lq_valid=Lq, mask_last=mask_lq)
        scratch = []
        if n_lq > 1:
            scratch = [pltpu.VMEM((TLK, 1), jnp.float32),
                       pltpu.VMEM((TLK, 1), jnp.float32),
                       pltpu.VMEM((TLK, F_pad), jnp.float32)]
        cost = pl.CostEstimate(
            flops=4 * B * Lk_pad * Lq_pad * F_pad,
            transcendentals=B * Lk_pad * Lq_pad,
            bytes_accessed=int(B * (Lq_pad * F_pad * (q_sz + v_sz)
                                    + Lk_pad * F_pad * (k_sz + out_sz))))
        out = pl.pallas_call(
            kernel,
            out_shape=jax.ShapeDtypeStruct((B, Lk_pad, F_pad), out_dtype),
            grid_spec=pltpu.PrefetchScalarGridSpec(
                num_scalar_prefetch=0,
                grid=(B, n_lk),
                in_specs=[pl.BlockSpec((1, Lq_pad, F_pad), lambda bi, ki: (bi, 0, 0)),
                          pl.BlockSpec((1, TLK, F_pad), lambda bi, ki: (bi, ki, 0)),
                          pl.BlockSpec((1, Lq_pad, F_pad), lambda bi, ki: (bi, 0, 0))],
                out_specs=pl.BlockSpec((1, TLK, F_pad), lambda bi, ki: (bi, ki, 0)),
                scratch_shapes=scratch),
            compiler_params=pltpu.CompilerParams(
                dimension_semantics=("parallel", "parallel"),
                vmem_limit_bytes=_vmem_limit(vmem_cap, est_resident)),
            cost_estimate=cost,
        )(q, k, v)
        return out[:, :Lk, :F]

    # ---- fallback: (B, n_lk, n_lq) flash-style grid ---------------------------
    if params is None and n_lk >= 3:
        # Q/V are re-streamed n_lk times -> pre-casting to bf16 pays for itself.
        q = q.astype(compute_dtype)
        v = v.astype(compute_dtype)
        q_sz = v_sz = cd_sz

    deep_qv = _is_v5e()   # extra input buffering on bandwidth-poor v5e

    def _qv_spec(shape, index_map):
        if deep_qv:
            try:
                return pl.BlockSpec(shape, index_map, pipeline_mode=pl.Buffered(3))
            except TypeError:
                pass
        return pl.BlockSpec(shape, index_map)

    kernel = functools.partial(
        _attn_grid_lq_kernel,
        compute_dtype=compute_dtype, exp_dtype=exp_dtype,
        lq_valid=Lq, lq_tile=TLQ, mask_lq=mask_lq)
    est_grid = (2 * (TLK * k_sz + TLQ * (q_sz + v_sz)) * F_pad
                + 2 * TLK * F_pad * out_sz
                + (TLK * F_pad + 2 * TLK) * 4
                + 4 * TLK * TLQ * 4)
    cost = pl.CostEstimate(
        flops=4 * B * Lk_pad * Lq_pad * F_pad,
        transcendentals=B * Lk_pad * Lq_pad,
        bytes_accessed=int(B * (n_lk * Lq_pad * F_pad * (q_sz + v_sz)
                                + Lk_pad * F_pad * (k_sz + out_sz))))
    out = pl.pallas_call(
        kernel,
        out_shape=jax.ShapeDtypeStruct((B, Lk_pad, F_pad), out_dtype),
        grid_spec=pltpu.PrefetchScalarGridSpec(
            num_scalar_prefetch=0,
            grid=(B, n_lk, n_lq),
            in_specs=[_qv_spec((1, TLQ, F_pad), lambda bi, ki, qi: (bi, qi, 0)),
                      pl.BlockSpec((1, TLK, F_pad), lambda bi, ki, qi: (bi, ki, 0)),
                      _qv_spec((1, TLQ, F_pad), lambda bi, ki, qi: (bi, qi, 0))],
            out_specs=pl.BlockSpec((1, TLK, F_pad), lambda bi, ki, qi: (bi, ki, 0)),
            scratch_shapes=[pltpu.VMEM((TLK, 1), jnp.float32),
                            pltpu.VMEM((TLK, 1), jnp.float32),
                            pltpu.VMEM((TLK, F_pad), jnp.float32)]),
        compiler_params=pltpu.CompilerParams(
            dimension_semantics=("parallel", "parallel", "arbitrary"),
            vmem_limit_bytes=_vmem_limit(vmem_cap, est_grid)),
        cost_estimate=cost,
    )(q, k, v)
    return out[:, :Lk, :F]


# ----------------------------------------------------------------------------
# Reference + demo
# ----------------------------------------------------------------------------
def _init_linear(key, fan_in, fan_out):
    # nn.Linear default init: U(-1/sqrt(fan_in), 1/sqrt(fan_in))
    kw, kb = jax.random.split(key)
    bound = 1.0 / np.sqrt(fan_in)
    w = jax.random.uniform(kw, (fan_out, fan_in), jnp.float32, -bound, bound)
    b = jax.random.uniform(kb, (fan_out,), jnp.float32, -bound, bound)
    return w, b


def _make_params(key, F):
    kq, kk, kv = jax.random.split(key, 3)
    wq, bq = _init_linear(kq, F, F)
    wk, bk = _init_linear(kk, F, F)
    wv, bv = _init_linear(kv, F, F)
    # Pre-transposed weights: kernel computes x @ W_t + b  (== torch x @ W.T + b)
    return dict(wq_t=wq.T, bq=bq.reshape(1, F),
                wk_t=wk.T, bk=bk.reshape(1, F),
                wv_t=wv.T, bv=bv.reshape(1, F))


def _reference(query, key, value, params, compute_dtype, exp_dtype):
    """Pure-JAX reference mirroring the kernel's mixed precision (bf16 MXU
    operands, f32 accumulation, exp in exp_dtype). Math matches the PyTorch
    module: softmax(k q^T, -1) @ v, no 1/sqrt(d) scaling."""
    cd = compute_dtype
    if params is not None:
        def lin(x, w_t, b):
            y = jnp.dot(x.astype(cd), w_t.astype(cd),
                        preferred_element_type=jnp.float32) + b
            return y.astype(cd)
        q = lin(query, params["wq_t"], params["bq"])
        k = lin(key, params["wk_t"], params["bk"])
        v = lin(value, params["wv_t"], params["bv"])
    else:
        q, k, v = (t.astype(cd) for t in (query, key, value))
    s = jnp.einsum("bkf,bqf->bkq", k, q, preferred_element_type=jnp.float32)
    m = jnp.max(s, axis=-1, keepdims=True)
    p = jnp.exp((s - m).astype(exp_dtype)).astype(jnp.float32)
    p = p / jnp.sum(p, axis=-1, keepdims=True)
    out = jnp.einsum("bkq,bqf->bkf", p.astype(cd), v,
                     preferred_element_type=jnp.float32)
    return out.astype(query.dtype)


if __name__ == "__main__":
    keys = jax.random.split(jax.random.PRNGKey(0), 8)
    exp_dt = _default_exp_dtype()

    # Case 1: projection path (num_features=F), B=2, seq=8, features=32.
    B, L, F = 2, 8, 32
    query = jax.random.normal(keys[0], (B, L, F), jnp.float32)
    key_t = jax.random.normal(keys[1], (B, L, F), jnp.float32)
    value = jax.random.normal(keys[2], (B, L, F), jnp.float32)
    params = _make_params(keys[3], F)

    out = jax.block_until_ready(dot_product_attention(query, key_t, value, params))
    ref = _reference(query, key_t, value, params, jnp.bfloat16, exp_dt)
    np.testing.assert_allclose(np.asarray(out), np.asarray(ref), rtol=2e-2, atol=2e-2)

    # Case 2: no-projection path (num_features=None) — projections skipped statically.
    out2 = jax.block_until_ready(dot_product_attention(query, key_t, value, None))
    ref2 = _reference(query, key_t, value, None, jnp.bfloat16, exp_dt)
    np.testing.assert_allclose(np.asarray(out2), np.asarray(ref2), rtol=2e-2, atol=2e-2)

    # Case 3: ragged shapes exercise F/Lk/Lq padding, the masked last Lq chunk and
    # the in-kernel multi-chunk online softmax of the Lq-resident path.
    B3, L3, F3 = 2, 13, 48
    q3 = jax.random.normal(keys[4], (B3, L3, F3), jnp.float32)
    k3 = jax.random.normal(keys[5], (B3, L3, F3), jnp.float32)
    v3 = jax.random.normal(keys[6], (B3, L3, F3), jnp.float32)
    params3 = _make_params(keys[7], F3)
    ref3 = _reference(q3, k3, v3, params3, jnp.bfloat16, exp_dt)

    out3 = jax.block_until_ready(
        dot_product_attention(q3, k3, v3, params3, lk_tile=8, lq_tile=8))
    np.testing.assert_allclose(np.asarray(out3), np.asarray(ref3), rtol=2e-2, atol=2e-2)

    # Case 4: force the (B, n_lk, n_lq) flash-style fallback grid (the path used
    # when Q/V do not fit in VMEM), with multi-tile online-softmax accumulation.
    out4 = jax.block_until_ready(
        dot_product_attention(q3, k3, v3, params3, lk_tile=8, lq_tile=8,
                              lq_resident=False))
    np.testing.assert_allclose(np.asarray(out4), np.asarray(ref3), rtol=2e-2, atol=2e-2)

    # Case 5: no-projection fallback path (f32 inputs cast on the fly in-kernel).
    out5 = jax.block_until_ready(
        dot_product_attention(q3, k3, v3, None, lk_tile=8, lq_tile=8,
                              lq_resident=False))
    ref5 = _reference(q3, k3, v3, None, jnp.bfloat16, exp_dt)
    np.testing.assert_allclose(np.asarray(out5), np.asarray(ref5), rtol=2e-2, atol=2e-2)

    print("KERNEL_OK")
</pallas_src>

<mosaic_0001>
module attributes {stable_mosaic.version = 11 : i64} {
  func.func @_linear_kernel(%arg0: i32, %arg1: i32, %arg2: i32, %arg3: memref<1x8x128xf32, #tpu.memory_space<vmem>>, %arg4: memref<128x128xbf16, #tpu.memory_space<vmem>>, %arg5: memref<1x128xf32, #tpu.memory_space<vmem>>, %arg6: memref<1x8x128xbf16, #tpu.memory_space<vmem>>) attributes {dimension_semantics = [#tpu.dimension_semantics<parallel>, #tpu.dimension_semantics<parallel>, #tpu.dimension_semantics<parallel>], iteration_bounds = array<i64: 2, 1, 1>, scalar_prefetch = 0 : i64, scratch_operands = 0 : i64, tpu.core_type = #tpu.core_type<tc>, window_params = [{transform_indices = @transform_0, window_bounds = array<i64: 1, 8, 128>}, {transform_indices = @transform_1, window_bounds = array<i64: 128, 128>}, {transform_indices = @transform_2, window_bounds = array<i64: 1, 128>}, {transform_indices = @transform_3, window_bounds = array<i64: 1, 8, 128>}]} {
    %c0 = arith.constant 0 : index
    %c0_0 = arith.constant 0 : index
    %c0_1 = arith.constant 0 : index
    %0 = vector.load %arg3[%c0, %c0_0, %c0_1] : memref<1x8x128xf32, #tpu.memory_space<vmem>>, vector<1x8x128xf32>
    %1 = vector.shape_cast %0 : vector<1x8x128xf32> to vector<8x128xf32>
    %2 = arith.truncf %1 : vector<8x128xf32> to vector<8x128xbf16>
    %c0_2 = arith.constant 0 : index
    %c0_3 = arith.constant 0 : index
    %3 = vector.load %arg4[%c0_2, %c0_3] : memref<128x128xbf16, #tpu.memory_space<vmem>>, vector<128x128xbf16>
    %cst = arith.constant dense<0.000000e+00> : vector<8x128xf32>
    %4 = tpu.matmul %2, %3, %cst {dimension_numbers = #tpu.dot_dimension_numbers<[1], [0], [0], [1], [0, 0, 1, 1], [], []>} : vector<8x128xbf16>, vector<128x128xbf16>, vector<8x128xf32> -> vector<8x128xf32>
    %c0_4 = arith.constant 0 : index
    %c0_5 = arith.constant 0 : index
    %5 = vector.load %arg5[%c0_4, %c0_5] : memref<1x128xf32, #tpu.memory_space<vmem>>, vector<1x128xf32>
    %6 = vector.broadcast %5 : vector<1x128xf32> to vector<8x128xf32>
    %7 = arith.addf %4, %6 : vector<8x128xf32>
    %8 = arith.truncf %7 : vector<8x128xf32> to vector<8x128xbf16>
    %c0_6 = arith.constant 0 : index
    %c0_7 = arith.constant 0 : index
    %c0_8 = arith.constant 0 : index
    %9 = vector.load %arg6[%c0_6, %c0_7, %c0_8] : memref<1x8x128xbf16, #tpu.memory_space<vmem>>, vector<1x8x128xbf16>
    %10 = vector.shape_cast %9 : vector<1x8x128xbf16> to vector<8x128xbf16>
    %11 = vector.shape_cast %8 : vector<8x128xbf16> to vector<1x8x128xbf16>
    tpu.vector_store %arg6[%c0_6, %c0_7, %c0_8], %11 {strides = array<i32>} : memref<1x8x128xbf16, #tpu.memory_space<vmem>>, vector<1x8x128xbf16>,
    return
  }
  func.func @transform_0(%arg0: i32, %arg1: i32, %arg2: i32) -> (i32, i32, i32) {
    %c0_i32 = arith.constant 0 : i32
    %c0_i32_0 = arith.constant 0 : i32
    return %arg0, %arg1, %c0_i32 : i32, i32, i32
  }
  func.func @transform_1(%arg0: i32, %arg1: i32, %arg2: i32) -> (i32, i32) {
    %c0_i32 = arith.constant 0 : i32
    %c0_i32_0 = arith.constant 0 : i32
    return %c0_i32, %arg2 : i32, i32
  }
  func.func @transform_2(%arg0: i32, %arg1: i32, %arg2: i32) -> (i32, i32) {
    %c0_i32 = arith.constant 0 : i32
    %c0_i32_0 = arith.constant 0 : i32
    return %c0_i32, %arg2 : i32, i32
  }
  func.func @transform_3(%arg0: i32, %arg1: i32, %arg2: i32) -> (i32, i32, i32) {
    %c0_i32 = arith.constant 0 : i32
    return %arg0, %arg1, %arg2 : i32, i32, i32
  }
}

</mosaic_0001>

<llo_original>
// kernel: tpu_custom_call.1
$region0: #{tpu_custom_call.1}
  #allocation0 [shape = 'u32[]', space=smem, size = 0x4, offset = 0x4, fixed_abs, tag = 'smem constant byte address 0x4 - core index']
  #allocation1 [shape = 'u32[144,128]{1,0:T(1,128)}', space=vmem, size = 0x12000, scoped, tag = 'internal scratch']
  %s0 = inlined_call_operand.hbm [shape: f32[2,8,128], index: 0, kind: input, shape index: {}]
  %s1 = inlined_call_operand.hbm [shape: bf16[128,128], index: 1, kind: input, shape index: {}]
  %s2 = inlined_call_operand.vmem [shape: f32[1,128], index: 2, kind: input, shape index: {}]
  %s3 = inlined_call_operand.hbm [shape: bf16[2,8,128], index: 3, kind: output, shape index: {}]
  %s4 = sld [smem:[#allocation0]]
  $region53: #{tpu_custom_call.1} parent=0
    _
  %s6 = ssub.s32 1, %s4
  %s7 = scalar_select 0, %s6, %s4
  $region1: #{tpu_custom_call.1} parent=0
    #allocation2 [shape = 'u8[8192]{0}', space=vmem, size = 0x2000, scoped, tag = 'input window, operand 0']
    #allocation3 [shape = 's32[2]{0}', space=sflag, size = 0x8, scoped, tag = 'scoped memory for tpu_custom_call.1']
    #allocation4 [shape = 's32[2]{0}', space=sflag, size = 0x8, scoped, tag = 'scoped memory for tpu_custom_call.1']
    #allocation5 [shape = 'u8[32768]{0}', space=vmem, size = 0x8000, scoped, tag = 'input window, operand 1, single buffered']
    #allocation6 [shape = 's32[1]{0}', space=sflag, size = 0x4, scoped, tag = 'scoped memory for tpu_custom_call.1']
    #allocation7 [shape = 'u8[4096]{0}', space=vmem, size = 0x1000, scoped, tag = 'output window, operand 0']
    %8 = vsyncpa [#allocation3], 0
    %s9 = scalar_lea.sflag [#allocation3], 1
    %10 = vsyncpa %s9, 0
    %11 = vsyncpa [#allocation6], 0
    %12 = vsyncpa [#allocation4], 0
    %s13 = scalar_lea.sflag [#allocation4], 1
    %14 = vsyncpa %s13, 0
    loop: start=0, step=1, limit=4
    $region2: #{tpu_custom_call.1} parent=1 // loop_pre_header
      _
    $region3: #{tpu_custom_call.1} parent=1 // loop_header
      %s16 = sphi 0, %s20
      %p17 = scmp.ge.s32.totalorder %s16, 4
      %s23 = sphi 0, %s42
      %s24 = sphi 0, %s38
      %s25 = sphi 0, %s34
      %s26 = sphi 0, %s23
      %s27 = sphi 0, %s24
      %s28 = sphi 0, %s25
      %s29 = sphi 0, %s26
      %s30 = sphi 0, %s27
      %s31 = sphi 0, %s28
      %s47 = sphi 0, %s49
      %s50 = sphi 0, %s47
      %s51 = sphi 0, %s50
      %s67 = sphi 0, %s51
      %s73 = sphi 0, %s75
      %s76 = sphi 0, %s73
      %s77 = sphi 0, %s76
      %s93 = sphi 0, %s77
      %s99 = sphi 0, %s101
      %s102 = sphi 0, %s99
      %s103 = sphi 0, %s102
      %s119 = sphi 0, %s103
      %s129 = sphi 0, %s131
      %s132 = sphi 0, %s129
      %s133 = sphi 0, %s132
      %s149 = sphi 0, %s133
    $region4: #{tpu_custom_call.1} parent=1 // loop_header_branch
      %19 = sbr.rel (%p17) target = $region8
    $region5: #{tpu_custom_call.1} parent=1 // loop_body
      %s21 = ssub.s32 %s16, 1
      %s22 = ssub.s32 %s16, 2
      %s32 = sadd.s32 1, %s25
      %p33 = scmp.ge.s32.totalorder %s32, 1
      %s34 = scalar_select %p33, 0, %s32
      %s35 = sadd.s32 1, %s24
      %s36 = scalar_select %p33, %s35, %s24
      %p37 = scmp.ge.s32.totalorder %s36, 1
      %s38 = scalar_select %p37, 0, %s36
      %s39 = sadd.s32 1, %s23
      %s40 = scalar_select %p37, %s39, %s23
      %p41 = scmp.ge.s32.totalorder %s40, 2
      %s42 = scalar_select %p41, 0, %s40
      %s43 = ssub.s32 %s23, %s42
      %s44 = ssub.s32 %s24, %s38
      %s45 = sor.u32 %s43, %s44
      %p46 = scmp.eq.s32.totalorder %s45, 0
      %s48 = sadd.s32 %s47, 1
      %s49 = scalar_select %p46, %s47, %s48
      %p52 = pneg %p46
      %p53 = scmp.eq.s32.totalorder %s16, 1
      %p54 = por %p52, %p53
      %p55 = scmp.ne.s32.totalorder %s47, %s50
      %p56 = scmp.eq.s32.totalorder %s16, 0
      %p57 = por %p55, %p56
      %p58 = scmp.ne.s32.totalorder %s47, %s50
      %p59 = scmp.eq.s32.totalorder %s21, 1
      %p60 = por %p58, %p59
      %p61 = scmp.ne.s32.totalorder %s50, %s51
      %p62 = scmp.eq.s32.totalorder %s21, 0
      %p63 = por %p61, %p62
      %p64 = scmp.ne.s32.totalorder %s50, %s51
      %p65 = scmp.eq.s32.totalorder %s22, 1
      %p66 = por %p64, %p65
      %p68 = scmp.ne.s32.totalorder %s51, %s67
      %p69 = scmp.eq.s32.totalorder %s22, 0
      %p70 = por %p68, %p69
      %s71 = ssub.s32 %s25, %s34
      %p72 = scmp.eq.s32.totalorder %s71, 0
      %s74 = sadd.s32 %s73, 1
      %s75 = scalar_select %p72, %s73, %s74
      %p78 = pneg %p72
      %p79 = scmp.eq.s32.totalorder %s16, 1
      %p80 = por %p78, %p79
      %p81 = scmp.ne.s32.totalorder %s73, %s76
      %p82 = scmp.eq.s32.totalorder %s16, 0
      %p83 = por %p81, %p82
      %p84 = scmp.ne.s32.totalorder %s73, %s76
      %p85 = scmp.eq.s32.totalorder %s21, 1
      %p86 = por %p84, %p85
      %p87 = scmp.ne.s32.totalorder %s76, %s77
      %p88 = scmp.eq.s32.totalorder %s21, 0
      %p89 = por %p87, %p88
      %p90 = scmp.ne.s32.totalorder %s76, %s77
      %p91 = scmp.eq.s32.totalorder %s22, 1
      %p92 = por %p90, %p91
      %p94 = scmp.ne.s32.totalorder %s77, %s93
      %p95 = scmp.eq.s32.totalorder %s22, 0
      %p96 = por %p94, %p95
      %s97 = ssub.s32 %s25, %s34
      %p98 = scmp.eq.s32.totalorder %s97, 0
      %s100 = sadd.s32 %s99, 1
      %s101 = scalar_select %p98, %s99, %s100
      %p104 = pneg %p98
      %p105 = scmp.eq.s32.totalorder %s16, 1
      %p106 = por %p104, %p105
      %p107 = scmp.ne.s32.totalorder %s99, %s102
      %p108 = scmp.eq.s32.totalorder %s16, 0
      %p109 = por %p107, %p108
      %p110 = scmp.ne.s32.totalorder %s99, %s102
      %p111 = scmp.eq.s32.totalorder %s21, 1
      %p112 = por %p110, %p111
      %p113 = scmp.ne.s32.totalorder %s102, %s103
      %p114 = scmp.eq.s32.totalorder %s21, 0
      %p115 = por %p113, %p114
      %p116 = scmp.ne.s32.totalorder %s102, %s103
      %p117 = scmp.eq.s32.totalorder %s22, 1
      %p118 = por %p116, %p117
      %p120 = scmp.ne.s32.totalorder %s103, %s119
      %p121 = scmp.eq.s32.totalorder %s22, 0
      %p122 = por %p120, %p121
      %s123 = ssub.s32 %s23, %s42
      %s124 = ssub.s32 %s24, %s38
      %s125 = sor.u32 %s123, %s124
      %s126 = ssub.s32 %s25, %s34
      %s127 = sor.u32 %s125, %s126
      %p128 = scmp.eq.s32.totalorder %s127, 0
      %s130 = sadd.s32 %s129, 1
      %s131 = scalar_select %p128, %s129, %s130
      %p134 = pneg %p128
      %p135 = scmp.eq.s32.totalorder %s16, 1
      %p136 = por %p134, %p135
      %p137 = scmp.ne.s32.totalorder %s129, %s132
      %p138 = scmp.eq.s32.totalorder %s16, 0
      %p139 = por %p137, %p138
      %p140 = scmp.ne.s32.totalorder %s129, %s132
      %p141 = scmp.eq.s32.totalorder %s21, 1
      %p142 = por %p140, %p141
      %p143 = scmp.ne.s32.totalorder %s132, %s133
      %p144 = scmp.eq.s32.totalorder %s21, 0
      %p145 = por %p143, %p144
      %p146 = scmp.ne.s32.totalorder %s132, %s133
      %p147 = scmp.eq.s32.totalorder %s22, 1
      %p148 = por %p146, %p147
      %p150 = scmp.ne.s32.totalorder %s133, %s149
      %p151 = scmp.eq.s32.totalorder %s22, 0
      %p152 = por %p150, %p151
      %p153 = scmp.le.s32.totalorder 1, %s16
      %p154 = scmp.lt.s32.totalorder %s16, 3
      %p155 = pnand %p153, %p154
      %p156 = pneg %p155
      // Predicated region
      $region9: #{tpu_custom_call.1} parent=5 // pred_check
        _
      $region10: #{tpu_custom_call.1} parent=5 // pred_check_branch
        %158 = sbr.rel (%p155) target = $region12
      $region11: #{tpu_custom_call.1} parent=5 // pred_region
        %s159 = ssub.s32 %s16, 1
        // Predicated region
        $region13: #{tpu_custom_call.1} parent=11 // pred_check
          %p160 = pneg %p89
        $region14: #{tpu_custom_call.1} parent=11 // pred_check_branch
          %162 = sbr.rel (%p160) target = $region16
        $region15: #{tpu_custom_call.1} parent=11 // pred_region
          %s164 = ssub.s32 1024, 1024
          %165 = vsyncadd [#allocation6], %s164
          %s166 = smul.addr %s28, 64
          %s167 = scalar_lea.hbm %s1, %s166
          %s168 = sshll.u32 [#allocation5], 4
          %s169 = int_to_ptr.vmem [resolvable:$true] %s168
          %174 = dma.hbm_to_vmem [thread:$0]  %s167, 1024, %s169, [#allocation6], 64, 64, 4
        $region16: #{tpu_custom_call.1} parent=11 // pred_fallthru
          _
        // Predicated region
        $region17: #{tpu_custom_call.1} parent=11 // pred_check
          %p175 = pneg %p115
        $region18: #{tpu_custom_call.1} parent=11 // pred_check_branch
          %177 = sbr.rel (%p175) target = $region20
        $region19: #{tpu_custom_call.1} parent=11 // pred_region
          %p178 = scmp.lt.s32.totalorder %s28, 0
          %s179 = scalar_select %p178, %s28, 0
          %s180 = scalar_lea.vmem %s2, %s179
        $region20: #{tpu_custom_call.1} parent=11 // pred_fallthru
          _
      $region12: #{tpu_custom_call.1} parent=5 // pred_fallthru
        _
      %p181 = scmp.lt.s32.totalorder %s16, 2
      // Predicated region
      $region21: #{tpu_custom_call.1} parent=5 // pred_check
        %p182 = pneg %p181
      $region22: #{tpu_custom_call.1} parent=5 // pred_check_branch
        %184 = sbr.rel (%p182) target = $region24
      $region23: #{tpu_custom_call.1} parent=5 // pred_region
        // Predicated region
        $region25: #{tpu_custom_call.1} parent=23 // pred_check
          %p185 = pneg %p57
        $region26: #{tpu_custom_call.1} parent=23 // pred_check_branch
          %187 = sbr.rel (%p185) target = $region28
        $region27: #{tpu_custom_call.1} parent=23 // pred_region
          %s188 = sand.u32 %s47, 1
          %s189 = scalar_lea.sflag [#allocation3], %s188
          %s190 = sand.u32 %s47, 1
          %s191 = smul.addr %s190, 8
          %s192 = scalar_lea.vmem [#allocation2], %s191
          %s194 = ssub.s32 128, 128
          %195 = vsyncadd %s189, %s194
          %s196 = sadd.s32 %s24, %s23
          %s197 = smul.addr %s196, 128
          %s198 = scalar_lea.hbm %s0, %s197
          %s200 = sshll.u32 %s192, 4
          %s201 = int_to_ptr.vmem [resolvable:$true] %s200
          %203 = dma.hbm_to_vmem [thread:$0]  %s198, 128, %s201, %s189
        $region28: #{tpu_custom_call.1} parent=23 // pred_fallthru
          _
      $region24: #{tpu_custom_call.1} parent=5 // pred_fallthru
        _
      %p204 = scmp.le.s32.totalorder 1, %s16
      %p205 = scmp.lt.s32.totalorder %s16, 3
      %p206 = pnand %p204, %p205
      %p207 = pneg %p206
      // Predicated region
      $region29: #{tpu_custom_call.1} parent=5 // pred_check
        _
      $region30: #{tpu_custom_call.1} parent=5 // pred_check_branch
        %209 = sbr.rel (%p206) target = $region32
      $region31: #{tpu_custom_call.1} parent=5 // pred_region
        %s210 = ssub.s32 %s16, 1
        %s211 = sand.u32 %s50, 1
        %s212 = scalar_lea.sflag [#allocation3], %s211
        %s213 = sand.u32 %s50, 1
        %s214 = smul.addr %s213, 8
        %s215 = scalar_lea.vmem [#allocation2], %s214
        // Predicated region
        $region33: #{tpu_custom_call.1} parent=31 // pred_check
          %p216 = pneg %p63
        $region34: #{tpu_custom_call.1} parent=31 // pred_check_branch
          %218 = sbr.rel (%p216) target = $region36
        $region35: #{tpu_custom_call.1} parent=31 // pred_region
          %219 = dma.done %s212, 128
        $region36: #{tpu_custom_call.1} parent=31 // pred_fallthru
          _
        // Predicated region
        $region37: #{tpu_custom_call.1} parent=31 // pred_check
          %p220 = pneg %p89
        $region38: #{tpu_custom_call.1} parent=31 // pred_check_branch
          %222 = sbr.rel (%p220) target = $region40
        $region39: #{tpu_custom_call.1} parent=31 // pred_region
          %223 = dma.done [#allocation6], 1024
        $region40: #{tpu_custom_call.1} parent=31 // pred_fallthru
          _
        %s224 = sand.u32 %s50, 1
        %s225 = scalar_lea.sflag [#allocation3], %s224
        %s226 = sand.u32 %s50, 1
        %s227 = smul.addr %s226, 8
        %s228 = scalar_lea.vmem [#allocation2], %s227
        %p229 = pneg %p63
        %p230 = pneg %p60
        %p231 = pneg %p89
        %p232 = pneg %p86
        %p233 = scmp.lt.s32.totalorder %s28, 0
        %s234 = scalar_select %p233, %s28, 0
        %s235 = scalar_lea.vmem %s2, %s234
        %p236 = pneg %p115
        %p237 = pneg %p112
        %p238 = pneg %p145
        %p239 = pneg %p142
        %s240 = sand.u32 %s132, 1
        %s241 = scalar_lea.sflag [#allocation4], %s240
        %s242 = sand.u32 %s132, 1
        %s243 = smul.addr %s242, 4
        %s244 = scalar_lea.vmem [#allocation7], %s243
        %p245 = scmp.lt.s32.totalorder %s28, 0
        %s246 = scalar_select %p245, %s28, 0
        %s247 = scalar_lea.vmem %s2, %s246
        %v249 = vld [vmem:[%s215] sm:$0xff]
        %v250 = vpack.c.bf16 %v249, %v249
        %v251 = vld [vmem:[#allocation5] sm:$0xf]
        %v252 = vld [vmem:[#allocation5 + $0x4] sm:$0xf]
        %v253 = vld [vmem:[#allocation5 + $0x8] sm:$0xf]
        %v254 = vld [vmem:[#allocation5 + $0xc] sm:$0xf]
        %v255 = vld [vmem:[#allocation5 + $0x10] sm:$0xf]
        %v256 = vld [vmem:[#allocation5 + $0x14] sm:$0xf]
        %v257 = vld [vmem:[#allocation5 + $0x18] sm:$0xf]
        %v258 = vld [vmem:[#allocation5 + $0x1c] sm:$0xf]
        %v259 = vld [vmem:[#allocation5 + $0x20] sm:$0xf]
        %v260 = vld [vmem:[#allocation5 + $0x24] sm:$0xf]
        %v261 = vld [vmem:[#allocation5 + $0x28] sm:$0xf]
        %v262 = vld [vmem:[#allocation5 + $0x2c] sm:$0xf]
        %v263 = vld [vmem:[#allocation5 + $0x30] sm:$0xf]
        %v264 = vld [vmem:[#allocation5 + $0x34] sm:$0xf]
        %v265 = vld [vmem:[#allocation5 + $0x38] sm:$0xf]
        %v266 = vld [vmem:[#allocation5 + $0x3c] sm:$0xf]
        %v267 = vld [vmem:[%s247] sm:$0x1]
        %v269 = vlaneseq
        %v270 = vshrl.u32 %v269, 7
        %v271 = vsub.s32 0, %v270
        %v272 = vrot.slane %v267, %v271
        %v290 = vunpack.c.l.b16 %v251
        %v291 = vunpack.c.l.b16 %v252
        %v292 = vunpack.c.l.b16 %v253
        %v293 = vunpack.c.l.b16 %v254
        %v294 = vunpack.c.l.b16 %v255
        %v295 = vunpack.c.l.b16 %v256
        %v296 = vunpack.c.l.b16 %v257
        %v297 = vunpack.c.l.b16 %v258
        %v298 = vunpack.c.l.b16 %v259
        %v299 = vunpack.c.l.b16 %v260
        %v300 = vunpack.c.l.b16 %v261
        %v301 = vunpack.c.l.b16 %v262
        %v302 = vunpack.c.l.b16 %v263
        %v303 = vunpack.c.l.b16 %v264
        %v304 = vunpack.c.l.b16 %v265
        %v305 = vunpack.c.l.b16 %v266
        %v306 = vpack.c.b16 %v291, %v290
        %v307 = vpack.c.b16 %v293, %v292
        %v308 = vpack.c.b16 %v295, %v294
        %v309 = vpack.c.b16 %v297, %v296
        %v310 = vpack.c.b16 %v299, %v298
        %v311 = vpack.c.b16 %v301, %v300
        %v312 = vpack.c.b16 %v303, %v302
        %v313 = vpack.c.b16 %v305, %v304
        %322 = vmatprep.subr.bf16.mxu0 0
        %323 = vmatpush1.bf16.msra.mxu0 %v306
        %324 = vmatprep.subr.bf16.mxu0 0
        %325 = vmatpush1.bf16.msra.mxu0 %v307
        %326 = vmatprep.subr.bf16.mxu0 0
        %327 = vmatpush1.bf16.msra.mxu0 %v308
        %328 = vmatprep.subr.bf16.mxu0 0
        %329 = vmatpush1.bf16.msra.mxu0 %v309
        %330 = vmatprep.subr.bf16.mxu0 0
        %331 = vmatpush1.bf16.msra.mxu0 %v310
        %332 = vmatprep.subr.bf16.mxu0 0
        %333 = vmatpush1.bf16.msra.mxu0 %v311
        %334 = vmatprep.subr.bf16.mxu0 0
        %335 = vmatpush1.bf16.msra.mxu0 %v312
        %336 = vmatprep.subr.bf16.mxu0 0
        %337 = vmatpush1.bf16.msra.mxu0 %v313
        %338 = vmatprep.subr.bf16.mxu0 0
        %339 = vmatpush1.bf16.msra.mxu0 0
        %340 = vmatprep.subr.bf16.mxu0 0
        %341 = vmatpush1.bf16.msra.mxu0 0
        %342 = vmatprep.subr.bf16.mxu0 0
        %343 = vmatpush1.bf16.msra.mxu0 0
        %344 = vmatprep.subr.bf16.mxu0 0
        %345 = vmatpush1.bf16.msra.mxu0 0
        %346 = vmatprep.subr.bf16.mxu0 0
        %347 = vmatpush1.bf16.msra.mxu0 0
        %348 = vmatprep.subr.bf16.mxu0 0
        %349 = vmatpush1.bf16.msra.mxu0 0
        %350 = vmatprep.subr.bf16.mxu0 0
        %351 = vmatpush1.bf16.msra.mxu0 0
        %352 = vmatprep.subr.bf16.mxu0 0
        %353 = vmatpush1.bf16.msra.mxu0 0
        %354 = vmatprep.mubr.bf16.mxu0 0
        %355 = vmatmul.mubr.bf16.gmra.mrb[0].mxu0 %v250
        %v356 = vpop.f32.mrb[0].mxu0
        %v357 = vadd.f32 %v272, %v356
        %v358 = vpop.f32.mrb[0].mxu0
        %v359 = vpop.f32.mrb[0].mxu0
        %v360 = vpop.f32.mrb[0].mxu0
        %361 = vdwg.mxu0
        %v362 = vpack.c.bf16 %v357, %v357
        %363 = vst [vmem:[%s244] sm:$0xf] %v362
        %s364 = sand.u32 %s132, 1
        %s365 = scalar_lea.sflag [#allocation4], %s364
        %s366 = sand.u32 %s132, 1
        %s367 = smul.addr %s366, 4
        %s368 = scalar_lea.vmem [#allocation7], %s367
        // Predicated region
        $region41: #{tpu_custom_call.1} parent=31 // pred_check
          %p369 = pneg %p142
        $region42: #{tpu_custom_call.1} parent=31 // pred_check_branch
          %371 = sbr.rel (%p369) target = $region44
        $region43: #{tpu_custom_call.1} parent=31 // pred_region
          %s373 = ssub.s32 64, 64
          %374 = vsyncadd %s365, %s373
          %s375 = sadd.s32 %s28, %s27
          %s376 = sadd.s32 %s375, %s26
          %s377 = smul.addr %s376, 64
          %s378 = scalar_lea.hbm %s3, %s377
          %s380 = sshll.u32 %s368, 4
          %s381 = int_to_ptr.vmem [resolvable:$true] %s380
          %383 = dma.vmem_to_hbm [thread:$0]  %s381, 64, %s378, %s365
        $region44: #{tpu_custom_call.1} parent=31 // pred_fallthru
          _
      $region32: #{tpu_custom_call.1} parent=5 // pred_fallthru
        _
      %p384 = scmp.le.s32.totalorder 2, %s16
      // Predicated region
      $region45: #{tpu_custom_call.1} parent=5 // pred_check
        %p385 = pneg %p384
      $region46: #{tpu_custom_call.1} parent=5 // pred_check_branch
        %387 = sbr.rel (%p385) target = $region48
      $region47: #{tpu_custom_call.1} parent=5 // pred_region
        %s388 = ssub.s32 %s16, 2
        // Predicated region
        $region49: #{tpu_custom_call.1} parent=47 // pred_check
          %p389 = pneg %p148
        $region50: #{tpu_custom_call.1} parent=47 // pred_check_branch
          %391 = sbr.rel (%p389) target = $region52
        $region51: #{tpu_custom_call.1} parent=47 // pred_region
          %s392 = sand.u32 %s133, 1
          %s393 = scalar_lea.sflag [#allocation4], %s392
          %s394 = sand.u32 %s133, 1
          %s395 = smul.addr %s394, 4
          %s396 = scalar_lea.vmem [#allocation7], %s395
          %397 = dma.done %s393, 64
        $region52: #{tpu_custom_call.1} parent=47 // pred_fallthru
          _
      $region48: #{tpu_custom_call.1} parent=5 // pred_fallthru
        _
    $region6: #{tpu_custom_call.1} parent=1 // loop_footer
      %s20 = sadd.s32 1, %s16
    $region7: #{tpu_custom_call.1} parent=1 // loop_footer_branch
      %15 = sbr.rel target = $region3
    $region8: #{tpu_custom_call.1} parent=1 // loop_exit
      _
    %398 = vsyncpa [#allocation3], 1
    %s399 = scalar_lea.sflag [#allocation3], 1
    %400 = vsyncpa %s399, 1
    %401 = vsyncpa [#allocation6], 1
    %402 = vsyncpa [#allocation4], 1
    %s403 = scalar_lea.sflag [#allocation4], 1
    %404 = vsyncpa %s403, 1

</llo_original>
